<compile_context>
chip_gen: v7x
topology: tpu7x:2x2x1
jax: 0.10.0
libtpu: 0.0.40
codegen_flags: <defaults>
</compile_context>

<pallas_src>
import math

import jax
import jax.numpy as jnp
from jax import lax
from jax.experimental import pallas as pl
from jax.experimental.pallas import tpu as pltpu

_NEG_INF = -1e30  # finite "masked" score (avoids inf arithmetic edge cases)


# ---------------------------------------------------------------------------
# 1/3) Tiled linear kernel:  y[b] = x[b] @ W + bias
# ---------------------------------------------------------------------------
def _linear_kernel(x_ref, w_ref, b_ref, o_ref):
    # x_ref: (1, tm, d_in)   w_ref: (d_in, tn)   b_ref: (1, tn) f32
    acc = jnp.dot(x_ref[0], w_ref[...], preferred_element_type=jnp.float32)
    o_ref[0] = (acc + b_ref[...]).astype(o_ref.dtype)


def _linear(x, w, bias, *, out_dtype, block_m=256, block_n=None):
    B, T, d_in = x.shape
    _, N = w.shape
    tm = min(block_m, T)
    tn = N if block_n is None else min(block_n, N)
    assert T % tm == 0 and N % tn == 0

    return pl.pallas_call(
        _linear_kernel,
        out_shape=jax.ShapeDtypeStruct((B, T, N), out_dtype),
        grid_spec=pltpu.PrefetchScalarGridSpec(
            num_scalar_prefetch=0,
            grid=(B, T // tm, N // tn),
            in_specs=[
                pl.BlockSpec((1, tm, d_in), lambda b, i, j: (b, i, 0)),
                pl.BlockSpec((d_in, tn), lambda b, i, j: (0, j)),
                pl.BlockSpec((1, tn), lambda b, i, j: (0, j)),
            ],
            out_specs=pl.BlockSpec((1, tm, tn), lambda b, i, j: (b, i, j)),
        ),
        compiler_params=pltpu.CompilerParams(
            dimension_semantics=("parallel", "parallel", "parallel"),
            vmem_limit_bytes=32 * 1024 * 1024,
        ),
    )(x, w, bias)


# ---------------------------------------------------------------------------
# 2) Causal flash attention over (batch*heads, q-tiles, kv-tiles)
# ---------------------------------------------------------------------------
def _flash_attn_kernel(q_ref, k_ref, v_ref, o_ref, m_scr, l_scr, acc_scr):
    # q_ref: (1, tq, Dh)   k_ref / v_ref: (1, tk, Dh)   o_ref: (1, tq, Dh)
    qi = pl.program_id(1)
    ki = pl.program_id(2)
    tq = q_ref.shape[1]
    tk = k_ref.shape[1]

    @pl.when(ki == 0)
    def _init():
        m_scr[...] = jnp.full(m_scr.shape, _NEG_INF, m_scr.dtype)
        l_scr[...] = jnp.zeros(l_scr.shape, l_scr.dtype)
        acc_scr[...] = jnp.zeros(acc_scr.shape, acc_scr.dtype)

    # kv tiles strictly above the diagonal are fully masked -> skip (tq == tk).
    @pl.when(ki <= qi)
    def _compute():
        q = q_ref[0]              # scale already folded into W_query
        k = k_ref[0]
        v = v_ref[0]

        # QK^T without an explicit transpose: contract last dim of both operands.
        s = lax.dot_general(q, k, (((1,), (1,)), ((), ())),
                            preferred_element_type=jnp.float32)      # (tq, tk)

        # Causal mask from global row/col indices of this tile pair.
        row = qi * tq + lax.broadcasted_iota(jnp.int32, (tq, tk), 0)
        col = ki * tk + lax.broadcasted_iota(jnp.int32, (tq, tk), 1)
        s = jnp.where(col > row, _NEG_INF, s)

        # Online softmax update.
        m_prev = m_scr[...]
        m_new = jnp.maximum(m_prev, jnp.max(s, axis=-1, keepdims=True))
        alpha = jnp.exp(m_prev - m_new)
        p = jnp.exp(s - m_new)
        l_scr[...] = alpha * l_scr[...] + jnp.sum(p, axis=-1, keepdims=True)
        acc_scr[...] = alpha * acc_scr[...] + jnp.dot(
            p.astype(v.dtype), v, preferred_element_type=jnp.float32)
        m_scr[...] = m_new

    @pl.when(ki == pl.num_programs(2) - 1)
    def _finalize():
        inv_l = pl.reciprocal(l_scr[...], approx=True)
        o_ref[0] = (acc_scr[...] * inv_l).astype(o_ref.dtype)
        # TODO(synk): nn.Dropout on attention weights omitted (eval / p=0 semantics).


def _flash_attention(q, k, v, *, block_q=128, block_kv=128):
    """Causal flash attention. q/k/v: (G, T, Dh) with G = batch * num_heads."""
    G, T, Dh = q.shape
    tq = min(block_q, T)
    tk = min(block_kv, T)
    assert tq == tk, "causal tile-skip condition assumes equal q/kv tile sizes"
    assert T % tq == 0 and T % tk == 0

    # Clamp the kv block index for skipped (fully masked) tiles so no DMA is
    # issued for them (block index unchanged => Pallas does not re-fetch).
    kv_index = lambda g, qi, ki: (g, jnp.minimum(ki, qi), 0)

    return pl.pallas_call(
        _flash_attn_kernel,
        out_shape=jax.ShapeDtypeStruct((G, T, Dh), q.dtype),
        grid_spec=pltpu.PrefetchScalarGridSpec(
            num_scalar_prefetch=0,
            grid=(G, T // tq, T // tk),
            in_specs=[
                pl.BlockSpec((1, tq, Dh), lambda g, qi, ki: (g, qi, 0)),
                pl.BlockSpec((1, tk, Dh), kv_index),
                pl.BlockSpec((1, tk, Dh), kv_index),
            ],
            out_specs=pl.BlockSpec((1, tq, Dh), lambda g, qi, ki: (g, qi, 0)),
            scratch_shapes=[
                pltpu.VMEM((tq, 1), jnp.float32),    # running max
                pltpu.VMEM((tq, 1), jnp.float32),    # running denominator
                pltpu.VMEM((tq, Dh), jnp.float32),   # output accumulator
            ],
        ),
        compiler_params=pltpu.CompilerParams(
            dimension_semantics=("parallel", "parallel", "arbitrary"),
            # tiles chosen so double-buffered blocks + scratch fit comfortably
            # inside v7x's 64 MiB physical VMEM (32 MiB scoped default).
            vmem_limit_bytes=32 * 1024 * 1024,
        ),
    )(q, k, v)


# ---------------------------------------------------------------------------
# Full module forward
# ---------------------------------------------------------------------------
def multi_head_attention(x, params, *, num_head, compute_dtype=jnp.bfloat16,
                         block_q=128, block_kv=128):
    """Forward pass of MultiHeadAttention (causal, eval semantics)."""
    B, T, d_in = x.shape
    d_out = params["wq"].shape[1]
    assert d_out % num_head == 0
    head_dim = d_out // num_head
    f32 = jnp.float32

    # Fold 1/sqrt(head_dim) into the query projection; fuse QKV into one weight.
    scale = 1.0 / math.sqrt(head_dim)
    wq_s = params["wq"].astype(f32) * scale
    bq_s = params["bq"].astype(f32) * scale
    w_qkv = jnp.concatenate(
        [wq_s, params["wk"].astype(f32), params["wv"].astype(f32)], axis=1
    ).astype(compute_dtype)                                          # (d_in, 3*d_out)
    b_qkv = jnp.concatenate(
        [bq_s, params["bk"].astype(f32), params["bv"].astype(f32)], axis=0
    ).reshape(1, 3 * d_out)                                          # f32 biases
    wo = params["wo"].astype(compute_dtype)
    bo = params["bo"].astype(f32).reshape(1, d_out)

    xc = x.astype(compute_dtype)

    # 1) fused QKV projection (single MXU matmul per row tile).
    qkv = _linear(xc, w_qkv, b_qkv, out_dtype=compute_dtype)         # (B, T, 3*d_out)

    # Wrapper-side layout plumbing: split heads and make them a grid dimension.
    qkv = qkv.reshape(B, T, 3, num_head, head_dim)
    qkv = jnp.transpose(qkv, (2, 0, 3, 1, 4))                        # (3, B, H, T, Dh)
    q = qkv[0].reshape(B * num_head, T, head_dim)
    k = qkv[1].reshape(B * num_head, T, head_dim)
    v = qkv[2].reshape(B * num_head, T, head_dim)

    # 2) causal flash attention.
    ctx = _flash_attention(q, k, v, block_q=block_q, block_kv=block_kv)

    # Merge heads: (B*H, T, Dh) -> (B, T, d_out).
    ctx = ctx.reshape(B, num_head, T, head_dim)
    ctx = jnp.transpose(ctx, (0, 2, 1, 3)).reshape(B, T, d_out)

    # 3) output projection.
    return _linear(ctx, wo, bo, out_dtype=x.dtype)


# ---------------------------------------------------------------------------
# Pure-JAX reference mirroring the PyTorch forward (dropout = identity).
# ---------------------------------------------------------------------------
def _reference(x, params, *, num_head):
    B, T, d_in = x.shape
    d_out = params["wq"].shape[1]
    head_dim = d_out // num_head

    def lin(a, w, b):
        return a @ w + b

    q = lin(x, params["wq"], params["bq"]).reshape(B, T, num_head, head_dim).transpose(0, 2, 1, 3)
    k = lin(x, params["wk"], params["bk"]).reshape(B, T, num_head, head_dim).transpose(0, 2, 1, 3)
    v = lin(x, params["wv"], params["bv"]).reshape(B, T, num_head, head_dim).transpose(0, 2, 1, 3)

    scores = jnp.einsum("bhtd,bhsd->bhts", q, k) / math.sqrt(head_dim)
    mask = jnp.triu(jnp.ones((T, T), dtype=bool), k=1)
    scores = jnp.where(mask, -jnp.inf, scores)
    w = jax.nn.softmax(scores, axis=-1)
    ctx = jnp.einsum("bhts,bhsd->bhtd", w, v)
    ctx = ctx.transpose(0, 2, 1, 3).reshape(B, T, d_out)
    return lin(ctx, params["wo"], params["bo"])


if __name__ == "__main__":
    B, T = 2, 16
    d_in, d_out = 32, 32
    num_head = 4
    # context_length >= T; the kernel builds the causal mask from iotas, which
    # matches the module's registered triu mask sliced to [:T, :T].

    key = jax.random.PRNGKey(0)
    keys = jax.random.split(key, 10)
    scale_in = 1.0 / math.sqrt(d_in)
    scale_out = 1.0 / math.sqrt(d_out)

    params = {
        "wq": jax.random.uniform(keys[0], (d_in, d_out), jnp.float32, -scale_in, scale_in),
        "bq": jax.random.uniform(keys[1], (d_out,), jnp.float32, -scale_in, scale_in),
        "wk": jax.random.uniform(keys[2], (d_in, d_out), jnp.float32, -scale_in, scale_in),
        "bk": jax.random.uniform(keys[3], (d_out,), jnp.float32, -scale_in, scale_in),
        "wv": jax.random.uniform(keys[4], (d_in, d_out), jnp.float32, -scale_in, scale_in),
        "bv": jax.random.uniform(keys[5], (d_out,), jnp.float32, -scale_in, scale_in),
        "wo": jax.random.uniform(keys[6], (d_out, d_out), jnp.float32, -scale_out, scale_out),
        "bo": jax.random.uniform(keys[7], (d_out,), jnp.float32, -scale_out, scale_out),
    }
    x = jax.random.normal(keys[8], (B, T, d_in), jnp.float32)

    ref = _reference(x, params, num_head=num_head)

    # Small q/kv tiles (8) so the 16-token sequence exercises the multi-tile
    # online-softmax and causal tile-skip paths.
    out = multi_head_attention(x, params, num_head=num_head,
                               compute_dtype=jnp.bfloat16, block_q=8, block_kv=8)
    out = jax.block_until_ready(out)
    assert out.shape == (B, T, d_out)
    assert jnp.allclose(out, ref, atol=5e-2, rtol=5e-2), "bf16 kernel mismatch vs reference"

    # f32 compute path (tighter tolerance) to validate the kernel logic itself.
    out_f32 = multi_head_attention(x, params, num_head=num_head,
                                   compute_dtype=jnp.float32, block_q=8, block_kv=8)
    out_f32 = jax.block_until_ready(out_f32)
    assert jnp.allclose(out_f32, ref, atol=5e-3, rtol=5e-3), "f32 kernel mismatch vs reference"

    print("KERNEL_OK")
</pallas_src>

<mosaic_0001>
module attributes {stable_mosaic.version = 11 : i64} {
  func.func @_linear_kernel(%arg0: i32, %arg1: i32, %arg2: i32, %arg3: memref<1x16x32xbf16, #tpu.memory_space<vmem>>, %arg4: memref<32x96xbf16, #tpu.memory_space<vmem>>, %arg5: memref<1x96xf32, #tpu.memory_space<vmem>>, %arg6: memref<1x16x96xbf16, #tpu.memory_space<vmem>>) attributes {dimension_semantics = [#tpu.dimension_semantics<parallel>, #tpu.dimension_semantics<parallel>, #tpu.dimension_semantics<parallel>], iteration_bounds = array<i64: 2, 1, 1>, scalar_prefetch = 0 : i64, scratch_operands = 0 : i64, tpu.core_type = #tpu.core_type<tc>, window_params = [{transform_indices = @transform_0, window_bounds = array<i64: 1, 16, 32>}, {transform_indices = @transform_1, window_bounds = array<i64: 32, 96>}, {transform_indices = @transform_2, window_bounds = array<i64: 1, 96>}, {transform_indices = @transform_3, window_bounds = array<i64: 1, 16, 96>}]} {
    %c0 = arith.constant 0 : index
    %c0_0 = arith.constant 0 : index
    %c0_1 = arith.constant 0 : index
    %0 = vector.load %arg3[%c0, %c0_0, %c0_1] : memref<1x16x32xbf16, #tpu.memory_space<vmem>>, vector<1x16x32xbf16>
    %1 = vector.shape_cast %0 : vector<1x16x32xbf16> to vector<16x32xbf16>
    %c0_2 = arith.constant 0 : index
    %c0_3 = arith.constant 0 : index
    %2 = vector.load %arg4[%c0_2, %c0_3] : memref<32x96xbf16, #tpu.memory_space<vmem>>, vector<32x96xbf16>
    %cst = arith.constant dense<0.000000e+00> : vector<16x96xf32>
    %3 = tpu.matmul %1, %2, %cst {dimension_numbers = #tpu.dot_dimension_numbers<[1], [0], [0], [1], [0, 0, 1, 1], [], []>} : vector<16x32xbf16>, vector<32x96xbf16>, vector<16x96xf32> -> vector<16x96xf32>
    %c0_4 = arith.constant 0 : index
    %c0_5 = arith.constant 0 : index
    %4 = vector.load %arg5[%c0_4, %c0_5] : memref<1x96xf32, #tpu.memory_space<vmem>>, vector<1x96xf32>
    %5 = vector.broadcast %4 : vector<1x96xf32> to vector<16x96xf32>
    %6 = arith.addf %3, %5 : vector<16x96xf32>
    %7 = arith.truncf %6 : vector<16x96xf32> to vector<16x96xbf16>
    %c0_6 = arith.constant 0 : index
    %c0_7 = arith.constant 0 : index
    %c0_8 = arith.constant 0 : index
    %8 = vector.load %arg6[%c0_6, %c0_7, %c0_8] : memref<1x16x96xbf16, #tpu.memory_space<vmem>>, vector<1x16x96xbf16>
    %9 = vector.shape_cast %8 : vector<1x16x96xbf16> to vector<16x96xbf16>
    %10 = vector.shape_cast %7 : vector<16x96xbf16> to vector<1x16x96xbf16>
    tpu.vector_store %arg6[%c0_6, %c0_7, %c0_8], %10 {strides = array<i32>} : memref<1x16x96xbf16, #tpu.memory_space<vmem>>, vector<1x16x96xbf16>,
    return
  }
  func.func @transform_0(%arg0: i32, %arg1: i32, %arg2: i32) -> (i32, i32, i32) {
    %c0_i32 = arith.constant 0 : i32
    %c0_i32_0 = arith.constant 0 : i32
    return %arg0, %arg1, %c0_i32 : i32, i32, i32
  }
  func.func @transform_1(%arg0: i32, %arg1: i32, %arg2: i32) -> (i32, i32) {
    %c0_i32 = arith.constant 0 : i32
    %c0_i32_0 = arith.constant 0 : i32
    return %c0_i32, %arg2 : i32, i32
  }
  func.func @transform_2(%arg0: i32, %arg1: i32, %arg2: i32) -> (i32, i32) {
    %c0_i32 = arith.constant 0 : i32
    %c0_i32_0 = arith.constant 0 : i32
    return %c0_i32, %arg2 : i32, i32
  }
  func.func @transform_3(%arg0: i32, %arg1: i32, %arg2: i32) -> (i32, i32, i32) {
    %c0_i32 = arith.constant 0 : i32
    return %arg0, %arg1, %arg2 : i32, i32, i32
  }
}

</mosaic_0001>

<llo_original>
// kernel: tpu_custom_call.1
$region0: #{tpu_custom_call.1}
  #allocation0 [shape = 'u32[]', space=smem, size = 0x4, offset = 0x4, fixed_abs, tag = 'smem constant byte address 0x4 - core index']
  #allocation1 [shape = 'u32[144,128]{1,0:T(1,128)}', space=vmem, size = 0x12000, scoped, tag = 'internal scratch']
  %s0 = inlined_call_operand.hbm [shape: bf16[2,16,32], index: 0, kind: input, shape index: {}]
  %s1 = inlined_call_operand.hbm [shape: bf16[32,96], index: 1, kind: input, shape index: {}]
  %s2 = inlined_call_operand.vmem [shape: f32[1,96], index: 2, kind: input, shape index: {}]
  %s3 = inlined_call_operand.hbm [shape: bf16[2,16,96], index: 3, kind: output, shape index: {}]
  %s4 = sld [smem:[#allocation0]]
  $region53: #{tpu_custom_call.1} parent=0
    _
  %s6 = ssub.s32 1, %s4
  %s7 = scalar_select 0, %s6, %s4
  $region1: #{tpu_custom_call.1} parent=0
    #allocation2 [shape = 'u8[8192]{0}', space=vmem, size = 0x2000, scoped, tag = 'input window, operand 0']
    #allocation3 [shape = 's32[2]{0}', space=sflag, size = 0x8, scoped, tag = 'scoped memory for tpu_custom_call.1']
    #allocation4 [shape = 's32[2]{0}', space=sflag, size = 0x8, scoped, tag = 'scoped memory for tpu_custom_call.1']
    #allocation5 [shape = 'u8[8192]{0}', space=vmem, size = 0x2000, scoped, tag = 'input window, operand 1, single buffered']
    #allocation6 [shape = 's32[1]{0}', space=sflag, size = 0x4, scoped, tag = 'scoped memory for tpu_custom_call.1']
    #allocation7 [shape = 'u8[8192]{0}', space=vmem, size = 0x2000, scoped, tag = 'output window, operand 0']
    %8 = vsyncpa [#allocation3], 0
    %s9 = scalar_lea.sflag [#allocation3], 1
    %10 = vsyncpa %s9, 0
    %11 = vsyncpa [#allocation6], 0
    %12 = vsyncpa [#allocation4], 0
    %s13 = scalar_lea.sflag [#allocation4], 1
    %14 = vsyncpa %s13, 0
    loop: start=0, step=1, limit=4
    $region2: #{tpu_custom_call.1} parent=1 // loop_pre_header
      _
    $region3: #{tpu_custom_call.1} parent=1 // loop_header
      %s16 = sphi 0, %s20
      %p17 = scmp.ge.s32.totalorder %s16, 4
      %s23 = sphi 0, %s42
      %s24 = sphi 0, %s38
      %s25 = sphi 0, %s34
      %s26 = sphi 0, %s23
      %s27 = sphi 0, %s24
      %s28 = sphi 0, %s25
      %s29 = sphi 0, %s26
      %s30 = sphi 0, %s27
      %s31 = sphi 0, %s28
      %s47 = sphi 0, %s49
      %s50 = sphi 0, %s47
      %s51 = sphi 0, %s50
      %s67 = sphi 0, %s51
      %s73 = sphi 0, %s75
      %s76 = sphi 0, %s73
      %s77 = sphi 0, %s76
      %s93 = sphi 0, %s77
      %s99 = sphi 0, %s101
      %s102 = sphi 0, %s99
      %s103 = sphi 0, %s102
      %s119 = sphi 0, %s103
      %s129 = sphi 0, %s131
      %s132 = sphi 0, %s129
      %s133 = sphi 0, %s132
      %s149 = sphi 0, %s133
    $region4: #{tpu_custom_call.1} parent=1 // loop_header_branch
      %19 = sbr.rel (%p17) target = $region8
    $region5: #{tpu_custom_call.1} parent=1 // loop_body
      %s21 = ssub.s32 %s16, 1
      %s22 = ssub.s32 %s16, 2
      %s32 = sadd.s32 1, %s25
      %p33 = scmp.ge.s32.totalorder %s32, 1
      %s34 = scalar_select %p33, 0, %s32
      %s35 = sadd.s32 1, %s24
      %s36 = scalar_select %p33, %s35, %s24
      %p37 = scmp.ge.s32.totalorder %s36, 1
      %s38 = scalar_select %p37, 0, %s36
      %s39 = sadd.s32 1, %s23
      %s40 = scalar_select %p37, %s39, %s23
      %p41 = scmp.ge.s32.totalorder %s40, 2
      %s42 = scalar_select %p41, 0, %s40
      %s43 = ssub.s32 %s23, %s42
      %s44 = ssub.s32 %s24, %s38
      %s45 = sor.u32 %s43, %s44
      %p46 = scmp.eq.s32.totalorder %s45, 0
      %s48 = sadd.s32 %s47, 1
      %s49 = scalar_select %p46, %s47, %s48
      %p52 = pneg %p46
      %p53 = scmp.eq.s32.totalorder %s16, 1
      %p54 = por %p52, %p53
      %p55 = scmp.ne.s32.totalorder %s47, %s50
      %p56 = scmp.eq.s32.totalorder %s16, 0
      %p57 = por %p55, %p56
      %p58 = scmp.ne.s32.totalorder %s47, %s50
      %p59 = scmp.eq.s32.totalorder %s21, 1
      %p60 = por %p58, %p59
      %p61 = scmp.ne.s32.totalorder %s50, %s51
      %p62 = scmp.eq.s32.totalorder %s21, 0
      %p63 = por %p61, %p62
      %p64 = scmp.ne.s32.totalorder %s50, %s51
      %p65 = scmp.eq.s32.totalorder %s22, 1
      %p66 = por %p64, %p65
      %p68 = scmp.ne.s32.totalorder %s51, %s67
      %p69 = scmp.eq.s32.totalorder %s22, 0
      %p70 = por %p68, %p69
      %s71 = ssub.s32 %s25, %s34
      %p72 = scmp.eq.s32.totalorder %s71, 0
      %s74 = sadd.s32 %s73, 1
      %s75 = scalar_select %p72, %s73, %s74
      %p78 = pneg %p72
      %p79 = scmp.eq.s32.totalorder %s16, 1
      %p80 = por %p78, %p79
      %p81 = scmp.ne.s32.totalorder %s73, %s76
      %p82 = scmp.eq.s32.totalorder %s16, 0
      %p83 = por %p81, %p82
      %p84 = scmp.ne.s32.totalorder %s73, %s76
      %p85 = scmp.eq.s32.totalorder %s21, 1
      %p86 = por %p84, %p85
      %p87 = scmp.ne.s32.totalorder %s76, %s77
      %p88 = scmp.eq.s32.totalorder %s21, 0
      %p89 = por %p87, %p88
      %p90 = scmp.ne.s32.totalorder %s76, %s77
      %p91 = scmp.eq.s32.totalorder %s22, 1
      %p92 = por %p90, %p91
      %p94 = scmp.ne.s32.totalorder %s77, %s93
      %p95 = scmp.eq.s32.totalorder %s22, 0
      %p96 = por %p94, %p95
      %s97 = ssub.s32 %s25, %s34
      %p98 = scmp.eq.s32.totalorder %s97, 0
      %s100 = sadd.s32 %s99, 1
      %s101 = scalar_select %p98, %s99, %s100
      %p104 = pneg %p98
      %p105 = scmp.eq.s32.totalorder %s16, 1
      %p106 = por %p104, %p105
      %p107 = scmp.ne.s32.totalorder %s99, %s102
      %p108 = scmp.eq.s32.totalorder %s16, 0
      %p109 = por %p107, %p108
      %p110 = scmp.ne.s32.totalorder %s99, %s102
      %p111 = scmp.eq.s32.totalorder %s21, 1
      %p112 = por %p110, %p111
      %p113 = scmp.ne.s32.totalorder %s102, %s103
      %p114 = scmp.eq.s32.totalorder %s21, 0
      %p115 = por %p113, %p114
      %p116 = scmp.ne.s32.totalorder %s102, %s103
      %p117 = scmp.eq.s32.totalorder %s22, 1
      %p118 = por %p116, %p117
      %p120 = scmp.ne.s32.totalorder %s103, %s119
      %p121 = scmp.eq.s32.totalorder %s22, 0
      %p122 = por %p120, %p121
      %s123 = ssub.s32 %s23, %s42
      %s124 = ssub.s32 %s24, %s38
      %s125 = sor.u32 %s123, %s124
      %s126 = ssub.s32 %s25, %s34
      %s127 = sor.u32 %s125, %s126
      %p128 = scmp.eq.s32.totalorder %s127, 0
      %s130 = sadd.s32 %s129, 1
      %s131 = scalar_select %p128, %s129, %s130
      %p134 = pneg %p128
      %p135 = scmp.eq.s32.totalorder %s16, 1
      %p136 = por %p134, %p135
      %p137 = scmp.ne.s32.totalorder %s129, %s132
      %p138 = scmp.eq.s32.totalorder %s16, 0
      %p139 = por %p137, %p138
      %p140 = scmp.ne.s32.totalorder %s129, %s132
      %p141 = scmp.eq.s32.totalorder %s21, 1
      %p142 = por %p140, %p141
      %p143 = scmp.ne.s32.totalorder %s132, %s133
      %p144 = scmp.eq.s32.totalorder %s21, 0
      %p145 = por %p143, %p144
      %p146 = scmp.ne.s32.totalorder %s132, %s133
      %p147 = scmp.eq.s32.totalorder %s22, 1
      %p148 = por %p146, %p147
      %p150 = scmp.ne.s32.totalorder %s133, %s149
      %p151 = scmp.eq.s32.totalorder %s22, 0
      %p152 = por %p150, %p151
      %p153 = scmp.le.s32.totalorder 1, %s16
      %p154 = scmp.lt.s32.totalorder %s16, 3
      %p155 = pnand %p153, %p154
      %p156 = pneg %p155
      // Predicated region
      $region9: #{tpu_custom_call.1} parent=5 // pred_check
        _
      $region10: #{tpu_custom_call.1} parent=5 // pred_check_branch
        %158 = sbr.rel (%p155) target = $region12
      $region11: #{tpu_custom_call.1} parent=5 // pred_region
        %s159 = ssub.s32 %s16, 1
        // Predicated region
        $region13: #{tpu_custom_call.1} parent=11 // pred_check
          %p160 = pneg %p89
        $region14: #{tpu_custom_call.1} parent=11 // pred_check_branch
          %162 = sbr.rel (%p160) target = $region16
        $region15: #{tpu_custom_call.1} parent=11 // pred_region
          %s164 = ssub.s32 256, 256
          %165 = vsyncadd [#allocation6], %s164
          %s166 = smul.addr %s28, 64
          %s167 = scalar_lea.hbm %s1, %s166
          %s168 = sshll.u32 [#allocation5], 4
          %s169 = int_to_ptr.vmem [resolvable:$true] %s168
          %174 = dma.hbm_to_vmem [thread:$0]  %s167, 256, %s169, [#allocation6], 64, 64, 4
        $region16: #{tpu_custom_call.1} parent=11 // pred_fallthru
          _
        // Predicated region
        $region17: #{tpu_custom_call.1} parent=11 // pred_check
          %p175 = pneg %p115
        $region18: #{tpu_custom_call.1} parent=11 // pred_check_branch
          %177 = sbr.rel (%p175) target = $region20
        $region19: #{tpu_custom_call.1} parent=11 // pred_region
          %p178 = scmp.lt.s32.totalorder %s28, 0
          %s179 = scalar_select %p178, %s28, 0
          %s180 = scalar_lea.vmem %s2, %s179
        $region20: #{tpu_custom_call.1} parent=11 // pred_fallthru
          _
      $region12: #{tpu_custom_call.1} parent=5 // pred_fallthru
        _
      %p181 = scmp.lt.s32.totalorder %s16, 2
      // Predicated region
      $region21: #{tpu_custom_call.1} parent=5 // pred_check
        %p182 = pneg %p181
      $region22: #{tpu_custom_call.1} parent=5 // pred_check_branch
        %184 = sbr.rel (%p182) target = $region24
      $region23: #{tpu_custom_call.1} parent=5 // pred_region
        // Predicated region
        $region25: #{tpu_custom_call.1} parent=23 // pred_check
          %p185 = pneg %p57
        $region26: #{tpu_custom_call.1} parent=23 // pred_check_branch
          %187 = sbr.rel (%p185) target = $region28
        $region27: #{tpu_custom_call.1} parent=23 // pred_region
          %s188 = sand.u32 %s47, 1
          %s189 = scalar_lea.sflag [#allocation3], %s188
          %s190 = sand.u32 %s47, 1
          %s191 = smul.addr %s190, 8
          %s192 = scalar_lea.vmem [#allocation2], %s191
          %s193 = smul.u32 2, %s24
          %s195 = ssub.s32 128, 128
          %196 = vsyncadd %s189, %s195
          %s197 = smul.addr %s23, 2
          %s198 = sadd.s32 %s193, %s197
          %s199 = smul.addr %s198, 64
          %s200 = scalar_lea.hbm %s0, %s199
          %s201 = sshll.u32 %s192, 4
          %s202 = int_to_ptr.vmem [resolvable:$true] %s201
          %207 = dma.hbm_to_vmem [thread:$0]  %s200, 128, %s202, %s189, 64, 64, 4
        $region28: #{tpu_custom_call.1} parent=23 // pred_fallthru
          _
      $region24: #{tpu_custom_call.1} parent=5 // pred_fallthru
        _
      %p208 = scmp.le.s32.totalorder 1, %s16
      %p209 = scmp.lt.s32.totalorder %s16, 3
      %p210 = pnand %p208, %p209
      %p211 = pneg %p210
      // Predicated region
      $region29: #{tpu_custom_call.1} parent=5 // pred_check
        _
      $region30: #{tpu_custom_call.1} parent=5 // pred_check_branch
        %213 = sbr.rel (%p210) target = $region32
      $region31: #{tpu_custom_call.1} parent=5 // pred_region
        %s214 = ssub.s32 %s16, 1
        %s215 = sand.u32 %s50, 1
        %s216 = scalar_lea.sflag [#allocation3], %s215
        %s217 = sand.u32 %s50, 1
        %s218 = smul.addr %s217, 8
        %s219 = scalar_lea.vmem [#allocation2], %s218
        // Predicated region
        $region33: #{tpu_custom_call.1} parent=31 // pred_check
          %p220 = pneg %p63
        $region34: #{tpu_custom_call.1} parent=31 // pred_check_branch
          %222 = sbr.rel (%p220) target = $region36
        $region35: #{tpu_custom_call.1} parent=31 // pred_region
          %223 = dma.done %s216, 128
        $region36: #{tpu_custom_call.1} parent=31 // pred_fallthru
          _
        // Predicated region
        $region37: #{tpu_custom_call.1} parent=31 // pred_check
          %p224 = pneg %p89
        $region38: #{tpu_custom_call.1} parent=31 // pred_check_branch
          %226 = sbr.rel (%p224) target = $region40
        $region39: #{tpu_custom_call.1} parent=31 // pred_region
          %227 = dma.done [#allocation6], 256
        $region40: #{tpu_custom_call.1} parent=31 // pred_fallthru
          _
        %s228 = sand.u32 %s50, 1
        %s229 = scalar_lea.sflag [#allocation3], %s228
        %s230 = sand.u32 %s50, 1
        %s231 = smul.addr %s230, 8
        %s232 = scalar_lea.vmem [#allocation2], %s231
        %p233 = pneg %p63
        %p234 = pneg %p60
        %p235 = pneg %p89
        %p236 = pneg %p86
        %p237 = scmp.lt.s32.totalorder %s28, 0
        %s238 = scalar_select %p237, %s28, 0
        %s239 = scalar_lea.vmem %s2, %s238
        %p240 = pneg %p115
        %p241 = pneg %p112
        %p242 = pneg %p145
        %p243 = pneg %p142
        %s244 = sand.u32 %s132, 1
        %s245 = scalar_lea.sflag [#allocation4], %s244
        %s246 = sand.u32 %s132, 1
        %s247 = smul.addr %s246, 8
        %s248 = scalar_lea.vmem [#allocation7], %s247
        %s249 = smul.u32 2, %s27
        %p250 = scmp.lt.s32.totalorder %s28, 0
        %s251 = scalar_select %p250, %s28, 0
        %s252 = scalar_lea.vmem %s2, %s251
        %s253 = smul.u32 2, %s27
        %v255 = vld [vmem:[%s219] sm:$0xf]
        %v256 = vld [vmem:[%s219 + $0x4] sm:$0xf]
        %v257 = vld [vmem:[#allocation5] sm:$0xf]
        %v258 = vld [vmem:[#allocation5 + $0x4] sm:$0xf]
        %v259 = vld [vmem:[#allocation5 + $0x8] sm:$0xf]
        %v260 = vld [vmem:[#allocation5 + $0xc] sm:$0xf]
        %v261 = vld [vmem:[%s252] sm:$0x1]
        %v263 = vlaneseq
        %v264 = vshrl.u32 %v263, 7
        %v265 = vsub.s32 0, %v264
        %v266 = vrot.slane %v261, %v265
        %v270 = vunpack.c.l.b16 %v255
        %v271 = vunpack.c.l.b16 %v256
        %v272 = vpack.c.b16 %v271, %v270
        %v277 = vunpack.c.l.b16 %v257
        %v278 = vunpack.c.l.b16 %v258
        %v279 = vunpack.c.l.b16 %v259
        %v280 = vunpack.c.l.b16 %v260
        %v281 = vpack.c.b16 %v278, %v277
        %v282 = vpack.c.b16 %v280, %v279
        %vm285 = vcmask 261120
        %v287 = vsel %vm285, %v272, 0
        %289 = vmatprep.subr.bf16.mxu0 0
        %290 = vmatpush1.bf16.msra.mxu0 %v281
        %291 = vmatprep.subr.bf16.mxu0 0
        %292 = vmatpush1.bf16.msra.mxu0 %v282
        %293 = vmatprep.subr.bf16.mxu0 0
        %294 = vmatpush1.bf16.msra.mxu0 0
        %295 = vmatprep.subr.bf16.mxu0 0
        %296 = vmatpush1.bf16.msra.mxu0 0
        %297 = vmatprep.subr.bf16.mxu0 0
        %298 = vmatpush1.bf16.msra.mxu0 0
        %299 = vmatprep.subr.bf16.mxu0 0
        %300 = vmatpush1.bf16.msra.mxu0 0
        %301 = vmatprep.subr.bf16.mxu0 0
        %302 = vmatpush1.bf16.msra.mxu0 0
        %303 = vmatprep.subr.bf16.mxu0 0
        %304 = vmatpush1.bf16.msra.mxu0 0
        %305 = vmatprep.subr.bf16.mxu0 0
        %306 = vmatpush1.bf16.msra.mxu0 0
        %307 = vmatprep.subr.bf16.mxu0 0
        %308 = vmatpush1.bf16.msra.mxu0 0
        %309 = vmatprep.subr.bf16.mxu0 0
        %310 = vmatpush1.bf16.msra.mxu0 0
        %311 = vmatprep.subr.bf16.mxu0 0
        %312 = vmatpush1.bf16.msra.mxu0 0
        %313 = vmatprep.subr.bf16.mxu0 0
        %314 = vmatpush1.bf16.msra.mxu0 0
        %315 = vmatprep.subr.bf16.mxu0 0
        %316 = vmatpush1.bf16.msra.mxu0 0
        %317 = vmatprep.subr.bf16.mxu0 0
        %318 = vmatpush1.bf16.msra.mxu0 0
        %319 = vmatprep.subr.bf16.mxu0 0
        %320 = vmatpush1.bf16.msra.mxu0 0
        %321 = vmatprep.mubr.bf16.mxu0 0
        %322 = vmatmul.mubr.bf16.gmra.mrb[0].mxu0 %v287
        %v323 = vpop.f32.mrb[0].mxu0
        %v324 = vadd.f32 %v266, %v323
        %v325 = vpop.f32.mrb[0].mxu0
        %v326 = vpop.f32.mrb[0].mxu0
        %v327 = vadd.f32 %v266, %v326
        %v328 = vpop.f32.mrb[0].mxu0
        %329 = vdwg.mxu0
        %v330 = vpack.c.bf16 %v327, %v324
        %v332 = vunpack.c.l.b16 %v330
        %v333 = vunpack.c.h.b16 %v330
        %v334 = vpack.c.b16 %v332, %v332
        %v335 = vpack.c.b16 %v333, %v333
        %vm338 = vcmask 781312
        %339 = vst.msk [vmem:[%s248] sm:$0xf] %vm338, %v334
        %340 = vst.msk [vmem:[%s248 + $0x4] sm:$0xf] %vm338, %v335
        %s341 = sand.u32 %s132, 1
        %s342 = scalar_lea.sflag [#allocation4], %s341
        %s343 = sand.u32 %s132, 1
        %s344 = smul.addr %s343, 8
        %s345 = scalar_lea.vmem [#allocation7], %s344
        // Predicated region
        $region41: #{tpu_custom_call.1} parent=31 // pred_check
          %p346 = pneg %p142
        $region42: #{tpu_custom_call.1} parent=31 // pred_check_branch
          %348 = sbr.rel (%p346) target = $region44
        $region43: #{tpu_custom_call.1} parent=31 // pred_region
          %s349 = smul.u32 2, %s27
          %s351 = ssub.s32 128, 128
          %352 = vsyncadd %s342, %s351
          %s353 = sadd.s32 %s28, %s349
          %s354 = smul.addr %s26, 2
          %s355 = sadd.s32 %s353, %s354
          %s356 = smul.addr %s355, 64
          %s357 = scalar_lea.hbm %s3, %s356
          %s358 = sshll.u32 %s345, 4
          %s359 = int_to_ptr.vmem [resolvable:$true] %s358
          %364 = dma.vmem_to_hbm [thread:$0]  %s359, 128, %s357, %s342, 64, 64, 4
        $region44: #{tpu_custom_call.1} parent=31 // pred_fallthru
          _
      $region32: #{tpu_custom_call.1} parent=5 // pred_fallthru
        _
      %p365 = scmp.le.s32.totalorder 2, %s16
      // Predicated region
      $region45: #{tpu_custom_call.1} parent=5 // pred_check
        %p366 = pneg %p365
      $region46: #{tpu_custom_call.1} parent=5 // pred_check_branch
        %368 = sbr.rel (%p366) target = $region48
      $region47: #{tpu_custom_call.1} parent=5 // pred_region
        %s369 = ssub.s32 %s16, 2
        // Predicated region
        $region49: #{tpu_custom_call.1} parent=47 // pred_check
          %p370 = pneg %p148
        $region50: #{tpu_custom_call.1} parent=47 // pred_check_branch
          %372 = sbr.rel (%p370) target = $region52
        $region51: #{tpu_custom_call.1} parent=47 // pred_region
          %s373 = sand.u32 %s133, 1
          %s374 = scalar_lea.sflag [#allocation4], %s373
          %s375 = sand.u32 %s133, 1
          %s376 = smul.addr %s375, 8
          %s377 = scalar_lea.vmem [#allocation7], %s376
          %378 = dma.done %s374, 128
        $region52: #{tpu_custom_call.1} parent=47 // pred_fallthru
          _
      $region48: #{tpu_custom_call.1} parent=5 // pred_fallthru
        _
    $region6: #{tpu_custom_call.1} parent=1 // loop_footer
      %s20 = sadd.s32 1, %s16
    $region7: #{tpu_custom_call.1} parent=1 // loop_footer_branch
      %15 = sbr.rel target = $region3
    $region8: #{tpu_custom_call.1} parent=1 // loop_exit
      _
    %379 = vsyncpa [#allocation3], 1
    %s380 = scalar_lea.sflag [#allocation3], 1
    %381 = vsyncpa %s380, 1
    %382 = vsyncpa [#allocation6], 1
    %383 = vsyncpa [#allocation4], 1
    %s384 = scalar_lea.sflag [#allocation4], 1
    %385 = vsyncpa %s384, 1

</llo_original>
